<compile_context>
chip_gen: v5e
topology: v5e:2x2
jax: 0.10.0
libtpu: 0.0.40
codegen_flags: <defaults>
</compile_context>

<pallas_src>
import functools

import jax
import jax.numpy as jnp
from jax.experimental import pallas as pl
from jax.experimental.pallas import tpu as pltpu

EPS = 1e-5


def resblock_kernel(x_ref, wt_ref, gamma_ref, beta_ref, o_ref, *, inv_n, tf):
    # x_ref:  (N, F)  full contraction input, resident across all feature tiles
    # wt_ref: (F, TF) pre-transposed weight columns for this feature tile
    # gamma_ref / beta_ref: (1, TF)
    # o_ref:  (N, TF)
    mxu_dtype = wt_ref.dtype
    y = jnp.dot(x_ref[...].astype(mxu_dtype), wt_ref[...],
                preferred_element_type=jnp.float32)              # (N, TF), f32 accum

    # BatchNorm1d (training mode): per-feature batch mean and *biased* variance.
    # The Linear bias cancels exactly under the batch-mean subtraction, so it is
    # never materialized. inv_n is a static constant, so reductions are sum * const.
    mean = jnp.sum(y, axis=0, keepdims=True) * inv_n             # (1, TF)
    diff = y - mean
    var = jnp.sum(diff * diff, axis=0, keepdims=True) * inv_n    # (1, TF)
    scale = gamma_ref[...] * jax.lax.rsqrt(var + EPS)            # rsqrt -> EUP slot
    shift = beta_ref[...] - mean * scale                         # BN folded to one FMA;
                                                                 # `diff` not live past here

    # Residual tile sliced from the resident x block: start is j*tf with tf % 128 == 0,
    # so the lane slice is aligned and free (no extra HBM read, no VMEM copy).
    col0 = pl.multiple_of(pl.program_id(0) * tf, 128)
    x_tile = x_ref[:, pl.ds(col0, tf)]

    o_ref[...] = x_tile + jnp.maximum(y * scale + shift, 0.0)


def prepare_params(w, b, gamma, beta, *, mxu_dtype=jnp.float32):
    """One-time parameter prep (persist the transposed weight across calls).

    w: (F_out, F_in) PyTorch Linear weight -> returned as (F_in, F_out), cast to mxu_dtype.
    b: (F,) Linear bias -- cancels exactly under training-mode (batch-statistic) BatchNorm,
       so it is dropped. (If reused for eval-mode BN with running stats, add it back.)
    """
    del b
    f = w.shape[0]
    wt = jnp.asarray(w, jnp.float32).T.astype(mxu_dtype)          # (F_in, F_out)
    g2 = jnp.asarray(gamma, jnp.float32).reshape(1, f)
    be2 = jnp.asarray(beta, jnp.float32).reshape(1, f)
    return wt, g2, be2


def _pick_tf(f):
    # Single grid step for small F (overhead-bound regime); otherwise the widest
    # lane-dense tile that divides F (bigger tiles -> closer to HBM roofline).
    if f <= 512:
        return f
    for cand in (512, 256, 128):
        if f % cand == 0:
            return cand
    raise ValueError("F must be a multiple of 128 for lane-dense feature tiling")


def resblock_forward(x, wt, gamma2, beta2, *, tf=None, x_buffers=None):
    """x: (N, F); wt: (F, F) pre-transposed weight; gamma2/beta2: (1, F)."""
    n, f = x.shape
    assert wt.shape == (f, f) and gamma2.shape == (1, f) and beta2.shape == (1, f)
    if tf is None:
        tf = _pick_tf(f)
    assert f % tf == 0 and (tf == f or tf % 128 == 0), "feature tile must be lane-dense"

    x32 = x.astype(jnp.float32)
    inv_n = 1.0 / n  # static: a distinct batch size N recompiles (not a numerical issue)
    kernel = functools.partial(resblock_kernel, inv_n=inv_n, tf=tf)
    grid = (f // tf,)

    # VMEM budget: resident x (double-buffered worst case) + double-buffered W^T stream
    # + double-buffered output stream + gamma/beta tiles.
    wt_bytes = jnp.dtype(wt.dtype).itemsize
    est = 2 * n * f * 4 + 2 * f * tf * wt_bytes + 2 * n * tf * 4 + 4 * tf * 4
    vmem_limit = max(32 << 20, min(96 << 20, est * 3 // 2))
    # TODO(synk): beyond ~48 MiB per-TC (v7x: 64 MiB VMEM/TC) add a K grid axis with a
    # pl.when-guarded f32 accumulator, and for large N a two-pass BN instead of resident x.

    # Full-K x with a constant index map -> fetched once, resident across feature tiles.
    # For large N, pass x_buffers=1 to halve its VMEM footprint (it is never re-fetched).
    if x_buffers is None:
        x_spec = pl.BlockSpec((n, f), lambda j: (0, 0))
    else:
        x_spec = pl.BlockSpec((n, f), lambda j: (0, 0),
                              pipeline_mode=pl.Buffered(x_buffers))

    return pl.pallas_call(
        kernel,
        out_shape=jax.ShapeDtypeStruct((n, f), jnp.float32),
        grid_spec=pltpu.PrefetchScalarGridSpec(
            num_scalar_prefetch=0,
            grid=grid,
            in_specs=[
                x_spec,                                     # x, full K (no residual copy)
                pl.BlockSpec((f, tf), lambda j: (0, j)),    # W^T columns for this tile
                pl.BlockSpec((1, tf), lambda j: (0, j)),    # gamma
                pl.BlockSpec((1, tf), lambda j: (0, j)),    # beta
            ],
            out_specs=pl.BlockSpec((n, tf), lambda j: (0, j)),   # lane-dense store
        ),
        compiler_params=pltpu.CompilerParams(
            dimension_semantics=("parallel",),   # feature tiles split across TCs (v7x)
            vmem_limit_bytes=int(vmem_limit),
        ),
    )(x32, wt, gamma2, beta2)


def resblock_ref(x, w, b, gamma, beta):
    """Pure-JAX reference (keeps the bias, to verify the cancellation is exact)."""
    y = x @ w.T + b
    mean = jnp.mean(y, axis=0, keepdims=True)
    var = jnp.mean((y - mean) ** 2, axis=0, keepdims=True)
    y = gamma * (y - mean) / jnp.sqrt(var + EPS) + beta
    return x + jnp.maximum(y, 0.0)


if __name__ == "__main__":
    key = jax.random.PRNGKey(0)
    k_x, k_w, k_b = jax.random.split(key, 3)

    # Small shapes consistent with the module: batch=8, features=256 (module default shape).
    N, F = 8, 256
    x = jax.random.normal(k_x, (N, F), dtype=jnp.float32)

    # Deterministic synthetic parameters (PyTorch-style Linear init, fresh BatchNorm1d).
    bound = 1.0 / (F ** 0.5)
    w = jax.random.uniform(k_w, (F, F), minval=-bound, maxval=bound, dtype=jnp.float32)
    b = jax.random.uniform(k_b, (F,), minval=-bound, maxval=bound, dtype=jnp.float32)
    gamma = jnp.ones((F,), dtype=jnp.float32)   # BatchNorm1d default weight
    beta = jnp.zeros((F,), dtype=jnp.float32)   # BatchNorm1d default bias

    ref = resblock_ref(x, w, b, gamma, beta)

    # f32 path: tf auto-selects F=256 -> single grid step at this overhead-bound size.
    wt, g2, be2 = prepare_params(w, b, gamma, beta, mxu_dtype=jnp.float32)
    out = resblock_forward(x, wt, g2, be2)
    jax.block_until_ready(out)
    assert out.shape == (N, F)
    assert jnp.allclose(out, ref, atol=1e-4, rtol=1e-4), "f32 kernel mismatch vs reference"

    # bf16 weight stream (v6e/v7x HBM optimization): loose tolerance vs the f32 reference.
    wt16, g16, be16 = prepare_params(w, b, gamma, beta, mxu_dtype=jnp.bfloat16)
    out16 = resblock_forward(x, wt16, g16, be16)
    jax.block_until_ready(out16)
    assert jnp.allclose(out16, ref, atol=1e-1, rtol=1e-1), "bf16 kernel mismatch vs reference"

    # TODO(synk): BatchNorm1d running_mean/running_var buffer updates (training-mode side
    # effect; running var would need the unbiased N/(N-1) estimator) are not produced.

    print("KERNEL_OK")
</pallas_src>

<mosaic_0001>
module attributes {stable_mosaic.version = 11 : i64} {
  func.func @resblock_kernel(%arg0: i32, %arg1: memref<8x256xf32, #tpu.memory_space<vmem>>, %arg2: memref<256x256xf32, #tpu.memory_space<vmem>>, %arg3: memref<1x256xf32, #tpu.memory_space<vmem>>, %arg4: memref<1x256xf32, #tpu.memory_space<vmem>>, %arg5: memref<8x256xf32, #tpu.memory_space<vmem>>) attributes {dimension_semantics = [#tpu.dimension_semantics<parallel>], iteration_bounds = array<i64: 1>, scalar_prefetch = 0 : i64, scratch_operands = 0 : i64, tpu.core_type = #tpu.core_type<tc>, window_params = [{pipeline_mode = #tpu.pipeline_mode<synchronous>, transform_indices = @transform_0, window_bounds = array<i64: 8, 256>}, {transform_indices = @transform_1, window_bounds = array<i64: 256, 256>}, {transform_indices = @transform_2, window_bounds = array<i64: 1, 256>}, {transform_indices = @transform_3, window_bounds = array<i64: 1, 256>}, {transform_indices = @transform_4, window_bounds = array<i64: 8, 256>}]} {
    %c0 = arith.constant 0 : index
    %c0_0 = arith.constant 0 : index
    %0 = vector.load %arg1[%c0, %c0_0] : memref<8x256xf32, #tpu.memory_space<vmem>>, vector<8x256xf32>
    %c0_1 = arith.constant 0 : index
    %c0_2 = arith.constant 0 : index
    %1 = vector.load %arg2[%c0_1, %c0_2] : memref<256x256xf32, #tpu.memory_space<vmem>>, vector<256x256xf32>
    %cst = arith.constant dense<0.000000e+00> : vector<8x256xf32>
    %2 = tpu.matmul %0, %1, %cst {dimension_numbers = #tpu.dot_dimension_numbers<[1], [0], [0], [1], [0, 0, 1, 1], [], []>} : vector<8x256xf32>, vector<256x256xf32>, vector<8x256xf32> -> vector<8x256xf32>
    %cst_3 = arith.constant dense<0.000000e+00> : vector<256xf32>
    %3 = vector.multi_reduction <add>, %2, %cst_3 [0] : vector<8x256xf32> to vector<256xf32>
    %4 = vector.shape_cast %3 : vector<256xf32> to vector<1x256xf32>
    %cst_4 = arith.constant 1.250000e-01 : f32
    %5 = vector.broadcast %cst_4 : f32 to vector<1x256xf32>
    %6 = arith.mulf %4, %5 : vector<1x256xf32>
    %7 = vector.broadcast %6 : vector<1x256xf32> to vector<8x256xf32>
    %8 = arith.subf %2, %7 : vector<8x256xf32>
    %9 = arith.mulf %8, %8 : vector<8x256xf32>
    %cst_5 = arith.constant dense<0.000000e+00> : vector<256xf32>
    %10 = vector.multi_reduction <add>, %9, %cst_5 [0] : vector<8x256xf32> to vector<256xf32>
    %11 = vector.shape_cast %10 : vector<256xf32> to vector<1x256xf32>
    %cst_6 = arith.constant 1.250000e-01 : f32
    %12 = vector.broadcast %cst_6 : f32 to vector<1x256xf32>
    %13 = arith.mulf %11, %12 : vector<1x256xf32>
    %c0_7 = arith.constant 0 : index
    %c0_8 = arith.constant 0 : index
    %14 = vector.load %arg3[%c0_7, %c0_8] : memref<1x256xf32, #tpu.memory_space<vmem>>, vector<1x256xf32>
    %cst_9 = arith.constant 9.99999974E-6 : f32
    %15 = vector.broadcast %cst_9 : f32 to vector<1x256xf32>
    %16 = arith.addf %13, %15 : vector<1x256xf32>
    %17 = math.rsqrt %16 : vector<1x256xf32>
    %18 = arith.mulf %14, %17 : vector<1x256xf32>
    %c0_10 = arith.constant 0 : index
    %c0_11 = arith.constant 0 : index
    %19 = vector.load %arg4[%c0_10, %c0_11] : memref<1x256xf32, #tpu.memory_space<vmem>>, vector<1x256xf32>
    %20 = arith.mulf %6, %18 : vector<1x256xf32>
    %21 = arith.subf %19, %20 : vector<1x256xf32>
    %c256_i32 = arith.constant 256 : i32
    %22 = arith.muli %arg0, %c256_i32 : i32
    %23 = tpu.assume_multiple %22, 128 : i32
    %c0_12 = arith.constant 0 : index
    %24 = arith.index_cast %23 : i32 to index
    %25 = vector.load %arg1[%c0_12, %24] : memref<8x256xf32, #tpu.memory_space<vmem>>, vector<8x256xf32>
    %26 = vector.broadcast %18 : vector<1x256xf32> to vector<8x256xf32>
    %27 = arith.mulf %2, %26 : vector<8x256xf32>
    %28 = vector.broadcast %21 : vector<1x256xf32> to vector<8x256xf32>
    %29 = arith.addf %27, %28 : vector<8x256xf32>
    %cst_13 = arith.constant 0.000000e+00 : f32
    %30 = vector.broadcast %cst_13 : f32 to vector<8x256xf32>
    %31 = arith.maximumf %29, %30 : vector<8x256xf32>
    %32 = arith.addf %25, %31 : vector<8x256xf32>
    %c0_14 = arith.constant 0 : index
    %c0_15 = arith.constant 0 : index
    %33 = vector.load %arg5[%c0_14, %c0_15] : memref<8x256xf32, #tpu.memory_space<vmem>>, vector<8x256xf32>
    tpu.vector_store %arg5[%c0_14, %c0_15], %32 {strides = array<i32>} : memref<8x256xf32, #tpu.memory_space<vmem>>, vector<8x256xf32>,
    return
  }
  func.func @transform_0(%arg0: i32) -> (i32, i32) {
    %c0_i32 = arith.constant 0 : i32
    %c0_i32_0 = arith.constant 0 : i32
    %c0_i32_1 = arith.constant 0 : i32
    return %c0_i32, %c0_i32_0 : i32, i32
  }
  func.func @transform_1(%arg0: i32) -> (i32, i32) {
    %c0_i32 = arith.constant 0 : i32
    %c0_i32_0 = arith.constant 0 : i32
    return %c0_i32, %arg0 : i32, i32
  }
  func.func @transform_2(%arg0: i32) -> (i32, i32) {
    %c0_i32 = arith.constant 0 : i32
    %c0_i32_0 = arith.constant 0 : i32
    return %c0_i32, %arg0 : i32, i32
  }
  func.func @transform_3(%arg0: i32) -> (i32, i32) {
    %c0_i32 = arith.constant 0 : i32
    %c0_i32_0 = arith.constant 0 : i32
    return %c0_i32, %arg0 : i32, i32
  }
  func.func @transform_4(%arg0: i32) -> (i32, i32) {
    %c0_i32 = arith.constant 0 : i32
    %c0_i32_0 = arith.constant 0 : i32
    return %c0_i32, %arg0 : i32, i32
  }
}

</mosaic_0001>

<llo_original>
// kernel: tpu_custom_call.1
$region0: #{tpu_custom_call.1}
  #allocation0 [shape = 'u32[]', space=smem, size = 0x4, offset = 0x4, fixed_abs, tag = 'smem constant byte address 0x4 - core index']
  #allocation1 [shape = 'u32[72,128]{1,0:T(1,128)}', space=vmem, size = 0x9000, scoped, tag = 'internal scratch']
  %s0 = inlined_call_operand.hbm [shape: f32[8,256], index: 0, kind: input, shape index: {}]
  %s1 = inlined_call_operand.hbm [shape: f32[256,256], index: 1, kind: input, shape index: {}]
  %s2 = inlined_call_operand.hbm [shape: f32[1,256], index: 2, kind: input, shape index: {}]
  %s3 = inlined_call_operand.vmem [shape: f32[1,256], index: 3, kind: input, shape index: {}]
  %s4 = inlined_call_operand.hbm [shape: f32[8,256], index: 4, kind: output, shape index: {}]
  %s5 = sld [smem:[#allocation0]]
  $region38: #{tpu_custom_call.1} parent=0
    _
  %s7 = ssub.s32 1, %s5
  %s8 = scalar_select 0, %s7, %s5
  $region1: #{tpu_custom_call.1} parent=0
    #allocation2 [shape = 'u8[8192]{0}', space=vmem, size = 0x2000, scoped, tag = 'input window, operand 0, single buffered']
    #allocation3 [shape = 's32[1]{0}', space=sflag, size = 0x4, scoped, tag = 'scoped memory for tpu_custom_call.1']
    #allocation4 [shape = 's32[1]{0}', space=sflag, size = 0x4, scoped, tag = 'scoped memory for tpu_custom_call.1']
    #allocation5 [shape = 'u8[262144]{0}', space=vmem, size = 0x40000, scoped, tag = 'input window, operand 1, single buffered']
    #allocation6 [shape = 's32[1]{0}', space=sflag, size = 0x4, scoped, tag = 'scoped memory for tpu_custom_call.1']
    #allocation7 [shape = 'u8[1024]{0}', space=vmem, size = 0x400, scoped, tag = 'input window, operand 2, single buffered']
    #allocation8 [shape = 'u8[8192]{0}', space=vmem, size = 0x2000, scoped, tag = 'output window, operand 0, single buffered']
    %9 = vsyncpa [#allocation3], 0
    %10 = vsyncpa [#allocation6], 0
    %11 = vsyncpa [#allocation4], 0
    // Predicated region
    $region2: #{tpu_custom_call.1} parent=1 // pred_check
      _
    $region3: #{tpu_custom_call.1} parent=1 // pred_check_branch
      %13 = sbr.rel (0) target = $region5
    $region4: #{tpu_custom_call.1} parent=1 // pred_region
      %15 = vsyncadd [#allocation3], 0
      %s17 = sshll.u32 %s0, 4
      %s18 = int_to_ptr.hbm [resolvable:$true] %s17
      %s19 = sshll.u32 [#allocation2], 4
      %s20 = int_to_ptr.vmem [resolvable:$true] %s19
      %22 = dma.hbm_to_vmem [thread:$0]  %s18, 256, %s20, [#allocation3]
    $region5: #{tpu_custom_call.1} parent=1 // pred_fallthru
      _
    // Predicated region
    $region6: #{tpu_custom_call.1} parent=1 // pred_check
      _
    $region7: #{tpu_custom_call.1} parent=1 // pred_check_branch
      %24 = sbr.rel (0) target = $region9
    $region8: #{tpu_custom_call.1} parent=1 // pred_region
      %26 = vsyncadd [#allocation6], 0
      %s27 = sshll.u32 %s1, 4
      %s28 = int_to_ptr.hbm [resolvable:$true] %s27
      %s29 = sshll.u32 [#allocation5], 4
      %s30 = int_to_ptr.vmem [resolvable:$true] %s29
      %35 = dma.hbm_to_vmem [thread:$0]  %s28, 8192, %s30, [#allocation6], 256, 256, 16
    $region9: #{tpu_custom_call.1} parent=1 // pred_fallthru
      _
    // Predicated region
    $region10: #{tpu_custom_call.1} parent=1 // pred_check
      _
    $region11: #{tpu_custom_call.1} parent=1 // pred_check_branch
      %37 = sbr.rel (0) target = $region13
    $region12: #{tpu_custom_call.1} parent=1 // pred_region
      %39 = vsyncadd [#allocation6], 0
      %s41 = sshll.u32 %s2, 4
      %s42 = int_to_ptr.hbm [resolvable:$true] %s41
      %s43 = sshll.u32 [#allocation7], 4
      %s44 = int_to_ptr.vmem [resolvable:$true] %s43
      %46 = dma.hbm_to_vmem [thread:$0]  %s42, 32, %s44, [#allocation6]
    $region13: #{tpu_custom_call.1} parent=1 // pred_fallthru
      _
    // Predicated region
    $region14: #{tpu_custom_call.1} parent=1 // pred_check
      _
    $region15: #{tpu_custom_call.1} parent=1 // pred_check_branch
      %48 = sbr.rel (0) target = $region17
    $region16: #{tpu_custom_call.1} parent=1 // pred_region
      _
    $region17: #{tpu_custom_call.1} parent=1 // pred_fallthru
      _
    // Predicated region
    $region18: #{tpu_custom_call.1} parent=1 // pred_check
      _
    $region19: #{tpu_custom_call.1} parent=1 // pred_check_branch
      %50 = sbr.rel (0) target = $region21
    $region20: #{tpu_custom_call.1} parent=1 // pred_region
      %52 = dma.done [#allocation3], 256
    $region21: #{tpu_custom_call.1} parent=1 // pred_fallthru
      _
    // Predicated region
    $region22: #{tpu_custom_call.1} parent=1 // pred_check
      _
    $region23: #{tpu_custom_call.1} parent=1 // pred_check_branch
      %54 = sbr.rel (0) target = $region25
    $region24: #{tpu_custom_call.1} parent=1 // pred_region
      %56 = dma.done [#allocation6], 8192
    $region25: #{tpu_custom_call.1} parent=1 // pred_fallthru
      _
    // Predicated region
    $region26: #{tpu_custom_call.1} parent=1 // pred_check
      _
    $region27: #{tpu_custom_call.1} parent=1 // pred_check_branch
      %58 = sbr.rel (0) target = $region29
    $region28: #{tpu_custom_call.1} parent=1 // pred_region
      %60 = dma.done [#allocation6], 32
    $region29: #{tpu_custom_call.1} parent=1 // pred_fallthru
      _
    %v61 = vld [vmem:[#allocation2] sm:$0xff]
    %v62 = vld [vmem:[#allocation2 + $0x8] sm:$0xff]
    %v63 = vld [vmem:[#allocation5] sm:$0xff]
    %v64 = vld [vmem:[#allocation5 + $0x8] sm:$0xff]
    %v65 = vld [vmem:[#allocation5 + $0x10] sm:$0xff]
    %v66 = vld [vmem:[#allocation5 + $0x18] sm:$0xff]
    %v67 = vld [vmem:[#allocation5 + $0x20] sm:$0xff]
    %v68 = vld [vmem:[#allocation5 + $0x28] sm:$0xff]
    %v69 = vld [vmem:[#allocation5 + $0x30] sm:$0xff]
    %v70 = vld [vmem:[#allocation5 + $0x38] sm:$0xff]
    %v71 = vld [vmem:[#allocation5 + $0x40] sm:$0xff]
    %v72 = vld [vmem:[#allocation5 + $0x48] sm:$0xff]
    %v73 = vld [vmem:[#allocation5 + $0x50] sm:$0xff]
    %v74 = vld [vmem:[#allocation5 + $0x58] sm:$0xff]
    %v75 = vld [vmem:[#allocation5 + $0x60] sm:$0xff]
    %v76 = vld [vmem:[#allocation5 + $0x68] sm:$0xff]
    %v77 = vld [vmem:[#allocation5 + $0x70] sm:$0xff]
    %v78 = vld [vmem:[#allocation5 + $0x78] sm:$0xff]
    %v79 = vld [vmem:[#allocation5 + $0x80] sm:$0xff]
    %v80 = vld [vmem:[#allocation5 + $0x88] sm:$0xff]
    %v81 = vld [vmem:[#allocation5 + $0x90] sm:$0xff]
    %v82 = vld [vmem:[#allocation5 + $0x98] sm:$0xff]
    %v83 = vld [vmem:[#allocation5 + $0xa0] sm:$0xff]
    %v84 = vld [vmem:[#allocation5 + $0xa8] sm:$0xff]
    %v85 = vld [vmem:[#allocation5 + $0xb0] sm:$0xff]
    %v86 = vld [vmem:[#allocation5 + $0xb8] sm:$0xff]
    %v87 = vld [vmem:[#allocation5 + $0xc0] sm:$0xff]
    %v88 = vld [vmem:[#allocation5 + $0xc8] sm:$0xff]
    %v89 = vld [vmem:[#allocation5 + $0xd0] sm:$0xff]
    %v90 = vld [vmem:[#allocation5 + $0xd8] sm:$0xff]
    %v91 = vld [vmem:[#allocation5 + $0xe0] sm:$0xff]
    %v92 = vld [vmem:[#allocation5 + $0xe8] sm:$0xff]
    %v93 = vld [vmem:[#allocation5 + $0xf0] sm:$0xff]
    %v94 = vld [vmem:[#allocation5 + $0xf8] sm:$0xff]
    %v95 = vld [vmem:[#allocation5 + $0x100] sm:$0xff]
    %v96 = vld [vmem:[#allocation5 + $0x108] sm:$0xff]
    %v97 = vld [vmem:[#allocation5 + $0x110] sm:$0xff]
    %v98 = vld [vmem:[#allocation5 + $0x118] sm:$0xff]
    %v99 = vld [vmem:[#allocation5 + $0x120] sm:$0xff]
    %v100 = vld [vmem:[#allocation5 + $0x128] sm:$0xff]
    %v101 = vld [vmem:[#allocation5 + $0x130] sm:$0xff]
    %v102 = vld [vmem:[#allocation5 + $0x138] sm:$0xff]
    %v103 = vld [vmem:[#allocation5 + $0x140] sm:$0xff]
    %v104 = vld [vmem:[#allocation5 + $0x148] sm:$0xff]
    %v105 = vld [vmem:[#allocation5 + $0x150] sm:$0xff]
    %v106 = vld [vmem:[#allocation5 + $0x158] sm:$0xff]
    %v107 = vld [vmem:[#allocation5 + $0x160] sm:$0xff]
    %v108 = vld [vmem:[#allocation5 + $0x168] sm:$0xff]
    %v109 = vld [vmem:[#allocation5 + $0x170] sm:$0xff]
    %v110 = vld [vmem:[#allocation5 + $0x178] sm:$0xff]
    %v111 = vld [vmem:[#allocation5 + $0x180] sm:$0xff]
    %v112 = vld [vmem:[#allocation5 + $0x188] sm:$0xff]
    %v113 = vld [vmem:[#allocation5 + $0x190] sm:$0xff]
    %v114 = vld [vmem:[#allocation5 + $0x198] sm:$0xff]
    %v115 = vld [vmem:[#allocation5 + $0x1a0] sm:$0xff]
    %v116 = vld [vmem:[#allocation5 + $0x1a8] sm:$0xff]
    %v117 = vld [vmem:[#allocation5 + $0x1b0] sm:$0xff]
    %v118 = vld [vmem:[#allocation5 + $0x1b8] sm:$0xff]
    %v119 = vld [vmem:[#allocation5 + $0x1c0] sm:$0xff]
    %v120 = vld [vmem:[#allocation5 + $0x1c8] sm:$0xff]
    %v121 = vld [vmem:[#allocation5 + $0x1d0] sm:$0xff]
    %v122 = vld [vmem:[#allocation5 + $0x1d8] sm:$0xff]
    %v123 = vld [vmem:[#allocation5 + $0x1e0] sm:$0xff]
    %v124 = vld [vmem:[#allocation5 + $0x1e8] sm:$0xff]
    %v125 = vld [vmem:[#allocation5 + $0x1f0] sm:$0xff]
    %v126 = vld [vmem:[#allocation5 + $0x1f8] sm:$0xff]
    %127 = vmatpush.msra.mxu0 %v93
    %128 = vmatpush.msra.mxu0 %v91
    %129 = vmatpush.msra.mxu0 %v89
    %130 = vmatpush.msra.mxu0 %v87
    %131 = vmatpush.msra.mxu0 %v85
    %132 = vmatpush.msra.mxu0 %v83
    %133 = vmatpush.msra.mxu0 %v81
    %134 = vmatpush.msra.mxu0 %v79
    %135 = vmatpush.msra.mxu0 %v77
    %136 = vmatpush.msra.mxu0 %v75
    %137 = vmatpush.msra.mxu0 %v73
    %138 = vmatpush.msra.mxu0 %v71
    %139 = vmatpush.msra.mxu0 %v69
    %140 = vmatpush.msra.mxu0 %v67
    %141 = vmatpush.msra.mxu0 %v65
    %142 = vmatpush.msra.mxu0 %v63
    %143 = vmatmul.f32.gmra.mxu0 %v61
    %v144 = vpop.f32.mrf.mxu0
    %v145 = vadd.f32 0.0, %v144
    %146 = vdwg.mxu0
    %147 = vmatpush.msra.mxu0 %v125
    %148 = vmatpush.msra.mxu0 %v123
    %149 = vmatpush.msra.mxu0 %v121
    %150 = vmatpush.msra.mxu0 %v119
    %151 = vmatpush.msra.mxu0 %v117
    %152 = vmatpush.msra.mxu0 %v115
    %153 = vmatpush.msra.mxu0 %v113
    %154 = vmatpush.msra.mxu0 %v111
    %155 = vmatpush.msra.mxu0 %v109
    %156 = vmatpush.msra.mxu0 %v107
    %157 = vmatpush.msra.mxu0 %v105
    %158 = vmatpush.msra.mxu0 %v103
    %159 = vmatpush.msra.mxu0 %v101
    %160 = vmatpush.msra.mxu0 %v99
    %161 = vmatpush.msra.mxu0 %v97
    %162 = vmatpush.msra.mxu0 %v95
    %163 = vmatmul.f32.gmra.mxu0 %v62
    %v164 = vpop.f32.mrf.mxu0
    %v165 = vadd.f32 %v145, %v164
    %166 = vdwg.mxu0
    %167 = vmatpush.msra.mxu0 %v94
    %168 = vmatpush.msra.mxu0 %v92
    %169 = vmatpush.msra.mxu0 %v90
    %170 = vmatpush.msra.mxu0 %v88
    %171 = vmatpush.msra.mxu0 %v86
    %172 = vmatpush.msra.mxu0 %v84
    %173 = vmatpush.msra.mxu0 %v82
    %174 = vmatpush.msra.mxu0 %v80
    %175 = vmatpush.msra.mxu0 %v78
    %176 = vmatpush.msra.mxu0 %v76
    %177 = vmatpush.msra.mxu0 %v74
    %178 = vmatpush.msra.mxu0 %v72
    %179 = vmatpush.msra.mxu0 %v70
    %180 = vmatpush.msra.mxu0 %v68
    %181 = vmatpush.msra.mxu0 %v66
    %182 = vmatpush.msra.mxu0 %v64
    %183 = vmatmul.f32.gmra.mxu0 %v61
    %v184 = vpop.f32.mrf.mxu0
    %v185 = vadd.f32 0.0, %v184
    %186 = vdwg.mxu0
    %187 = vmatpush.msra.mxu0 %v126
    %188 = vmatpush.msra.mxu0 %v124
    %189 = vmatpush.msra.mxu0 %v122
    %190 = vmatpush.msra.mxu0 %v120
    %191 = vmatpush.msra.mxu0 %v118
    %192 = vmatpush.msra.mxu0 %v116
    %193 = vmatpush.msra.mxu0 %v114
    %194 = vmatpush.msra.mxu0 %v112
    %195 = vmatpush.msra.mxu0 %v110
    %196 = vmatpush.msra.mxu0 %v108
    %197 = vmatpush.msra.mxu0 %v106
    %198 = vmatpush.msra.mxu0 %v104
    %199 = vmatpush.msra.mxu0 %v102
    %200 = vmatpush.msra.mxu0 %v100
    %201 = vmatpush.msra.mxu0 %v98
    %202 = vmatpush.msra.mxu0 %v96
    %203 = vmatmul.f32.gmra.mxu0 %v62
    %v204 = vpop.f32.mrf.mxu0
    %v205 = vadd.f32 %v185, %v204
    %206 = vdwg.mxu0
    %v207 = vrot.slane %v165, 4
    %v208 = vadd.f32 %v165, %v207
    %v209 = vrot.slane %v208, 2
    %v210 = vadd.f32 %v208, %v209
    %v211 = vrot.slane %v210, 1
    %v212 = vadd.f32 %v210, %v211
    %v213 = vrot.slane %v205, 4
    %v214 = vadd.f32 %v205, %v213
    %v215 = vrot.slane %v214, 2
    %v216 = vadd.f32 %v214, %v215
    %v217 = vrot.slane %v216, 1
    %v218 = vadd.f32 %v216, %v217
    %v219 = vmul.f32 %v212, 0.125
    %v220 = vmul.f32 %v218, 0.125
    %v221 = vsub.f32 %v165, %v219
    %v222 = vsub.f32 %v205, %v220
    %v223 = vmul.f32 %v221, %v221
    %v224 = vmul.f32 %v222, %v222
    %v225 = vrot.slane %v223, 4
    %v226 = vadd.f32 %v223, %v225
    %v227 = vrot.slane %v226, 2
    %v228 = vadd.f32 %v226, %v227
    %v229 = vrot.slane %v228, 1
    %v230 = vadd.f32 %v228, %v229
    %v231 = vrot.slane %v224, 4
    %v232 = vadd.f32 %v224, %v231
    %v233 = vrot.slane %v232, 2
    %v234 = vadd.f32 %v232, %v233
    %v235 = vrot.slane %v234, 1
    %v236 = vadd.f32 %v234, %v235
    %v237 = vmul.f32 %v230, 0.125
    %v238 = vmul.f32 %v236, 0.125
    %v239 = vld [vmem:[#allocation7] sm:$0x3]
    %v240 = vadd.f32 %v237, 1e-05
    %v241 = vadd.f32 %v238, 1e-05
    %v242 = vrsqrt.pop %v240
    %v243 = vmul.f32 %v242, %v240
    %v244 = vmul.f32 %v243, %v242
    %v245 = vmul.f32 0.5, %v244
    %v246 = vsub.f32 1.5, %v245
    %v247 = vmul.f32 %v242, %v246
    %vm248 = vweird.f32 %v240
    %vm249 = vweird.f32 %v242
    %vm250 = vmor %vm248, %vm249
    %v251 = vsel %vm250, %v242, %v247
    %v252 = vrsqrt.pop %v241
    %v253 = vmul.f32 %v252, %v241
    %v254 = vmul.f32 %v253, %v252
    %v255 = vmul.f32 0.5, %v254
    %v256 = vsub.f32 1.5, %v255
    %v257 = vmul.f32 %v252, %v256
    %vm258 = vweird.f32 %v241
    %vm259 = vweird.f32 %v252
    %vm260 = vmor %vm258, %vm259
    %v261 = vsel %vm260, %v252, %v257
    %v264 = vrot.slane %v261, 7
    %vm265 = vcmask 1040384
    %v266 = vsel %vm265, %v251, %v264
    %v268 = vmul.f32 %v239, %v266
    %v269 = vld [vmem:[%s3] sm:$0x3]
    %v271 = vperm.slane %v268, 0
    %v272 = vperm.slane %v268, 1
    %v275 = vmul.f32 %v219, %v271
    %v276 = vmul.f32 %v220, %v272
    %v279 = vrot.slane %v276, 7
    %v280 = vsel %vm265, %v275, %v279
    %v282 = vsub.f32 %v269, %v280
    %s283 = smul.u32 0, 256
    %s284 = sshra.s32 %s283, 7
    %s285 = sand.u32 %s283, 127
    %s286 = smul.addr %s284, 8
    %s287 = scalar_lea.vmem [#allocation2], %s286
    %v288 = vld [vmem:[%s287] sm:$0xff]
    %v289 = vld [vmem:[%s287 + $0x8] sm:$0xff]
    %v290 = vmul.f32 %v165, %v271
    %v291 = vmul.f32 %v205, %v272
    %v293 = vperm.slane %v282, 0
    %v294 = vperm.slane %v282, 1
    %v297 = vadd.f32 %v290, %v293
    %v298 = vadd.f32 %v291, %v294
    %v299 = vmax.f32 %v297, 0.0
    %v300 = vmax.f32 %v298, 0.0
    %v301 = vadd.f32 %v288, %v299
    %v302 = vadd.f32 %v289, %v300
    %303 = vst [vmem:[#allocation8] sm:$0xff] %v301
    %304 = vst [vmem:[#allocation8 + $0x8] sm:$0xff] %v302
    // Predicated region
    $region30: #{tpu_custom_call.1} parent=1 // pred_check
      _
    $region31: #{tpu_custom_call.1} parent=1 // pred_check_branch
      %306 = sbr.rel (0) target = $region33
    $region32: #{tpu_custom_call.1} parent=1 // pred_region
      %308 = vsyncadd [#allocation4], 0
      %s310 = sshll.u32 [#allocation8], 4
      %s311 = int_to_ptr.vmem [resolvable:$true] %s310
      %s312 = sshll.u32 %s4, 4
      %s313 = int_to_ptr.hbm [resolvable:$true] %s312
      %315 = dma.vmem_to_hbm [thread:$0]  %s311, 256, %s313, [#allocation4]
    $region33: #{tpu_custom_call.1} parent=1 // pred_fallthru
      _
    // Predicated region
    $region34: #{tpu_custom_call.1} parent=1 // pred_check
      _
    $region35: #{tpu_custom_call.1} parent=1 // pred_check_branch
      %317 = sbr.rel (0) target = $region37
    $region36: #{tpu_custom_call.1} parent=1 // pred_region
      %319 = dma.done [#allocation4], 256
    $region37: #{tpu_custom_call.1} parent=1 // pred_fallthru
      _
    %320 = vsyncpa [#allocation3], 1
    %321 = vsyncpa [#allocation6], 1
    %322 = vsyncpa [#allocation4], 1

</llo_original>
